<compile_context>
chip_gen: v6e
topology: v6e:2x2x1
jax: 0.10.0
libtpu: 0.0.40
codegen_flags: <defaults>
</compile_context>

<pallas_src>
import functools

import jax
import jax.numpy as jnp
from jax.experimental import pallas as pl
from jax.experimental.pallas import tpu as pltpu

EPS = 1e-5


def _round_up(x, m):
    return ((x + m - 1) // m) * m


def _qke_kernel(x_ref, w_ref, b_ref, o_ref, *, rem):
    # x_ref: (1, C_in, TILE)  one batch element, one pixel tile (NCHW layout)
    # w_ref: (C_tr, C_in)     conv weight with LayerNorm gamma folded in
    # b_ref: (C_tr, 1)        conv_w @ beta (folded LayerNorm beta)
    # o_ref: (1, C_tr, TILE)
    x = x_ref[0].astype(jnp.float32)                       # (C_in, TILE)

    # Ragged last tile: the pixel axis over-covers the array by (TILE - rem)
    # columns. Pallas discards out-of-bounds output columns on store, but the
    # corresponding input columns hold unspecified data; zero them so no
    # Inf/NaN is ever produced. This branch is only compiled when rem != 0.
    if rem:
        is_last = pl.program_id(1) == pl.num_programs(1) - 1
        lane = jax.lax.broadcasted_iota(jnp.int32, x.shape, 1)
        keep = jnp.logical_or(jnp.logical_not(is_last), lane < rem)
        x = jnp.where(keep, x, 0.0)

    # Per-pixel LayerNorm over channels (biased variance, torch semantics).
    # Channels sit on the sublane axis -> cheap XLU reduction (C_in is tiny).
    mean = jnp.mean(x, axis=0, keepdims=True)               # (1, TILE)
    centered = x - mean
    var = jnp.mean(centered * centered, axis=0, keepdims=True)
    xn = centered * jax.lax.rsqrt(var + EPS)                 # (C_in, TILE)

    # 1x1 conv (gamma folded into W): (C_tr, C_in) @ (C_in, TILE) on the MXU,
    # then the folded-beta bias broadcast along the lane axis.
    y = jnp.dot(w_ref[...].astype(jnp.float32), xn,
                preferred_element_type=jnp.float32)          # (C_tr, TILE)
    y = y + b_ref[...].astype(jnp.float32)
    o_ref[0] = y.astype(o_ref.dtype)


def query_key_extractor(x_nchw, gamma, beta, conv_w, *, tile_pix=8192, out_dtype=None):
    """x_nchw: (B, C_in, H, W); conv_w: (C_tr, C_in) (PyTorch 1x1 conv weight squeezed)."""
    B, C_in, H, W = x_nchw.shape
    C_tr = conv_w.shape[0]
    npix = H * W
    out_dtype = x_nchw.dtype if out_dtype is None else out_dtype

    # Fold LayerNorm affine into the conv:
    #   conv_w @ (xn * gamma + beta) = (conv_w * gamma) @ xn + conv_w @ beta
    w_folded = conv_w.astype(jnp.float32) * gamma.astype(jnp.float32)[None, :]   # (C_tr, C_in)
    bias = (conv_w.astype(jnp.float32) @ beta.astype(jnp.float32)).reshape(C_tr, 1)

    # Stay in NCHW: flatten spatial dims only (free reshape, no transpose, no copy).
    x_flat = x_nchw.reshape(B, C_in, npix)

    # Lane-aligned pixel tile, as large as the cap allows (amortize per-step
    # overhead); never larger than the 128-rounded pixel count.
    tile = min(_round_up(tile_pix, 128), _round_up(npix, 128))
    # Keep >= 2 grid steps so megacore sharding can use both TensorCores (v7x).
    while B * pl.cdiv(npix, tile) < 2 and tile > 128:
        tile = _round_up(max(128, tile // 2), 128)
    n_tiles = pl.cdiv(npix, tile)
    rem = npix % tile                     # ragged columns in the last tile (0 = none)
    grid = (B, n_tiles)

    bytes_accessed = (B * C_in * npix * x_nchw.dtype.itemsize
                      + B * C_tr * npix * jnp.dtype(out_dtype).itemsize
                      + (C_tr * C_in + C_tr) * 4)
    flops = 2 * B * npix * C_in * C_tr + 8 * B * npix * C_in

    out_flat = pl.pallas_call(
        functools.partial(_qke_kernel, rem=rem),
        out_shape=jax.ShapeDtypeStruct((B, C_tr, npix), out_dtype),
        grid_spec=pltpu.PrefetchScalarGridSpec(
            num_scalar_prefetch=0,
            grid=grid,
            in_specs=[
                pl.BlockSpec((1, C_in, tile), lambda b, j: (b, 0, j)),
                pl.BlockSpec((C_tr, C_in), lambda b, j: (0, 0)),
                pl.BlockSpec((C_tr, 1), lambda b, j: (0, 0)),
            ],
            out_specs=pl.BlockSpec((1, C_tr, tile), lambda b, j: (b, 0, j)),
        ),
        compiler_params=pltpu.CompilerParams(
            dimension_semantics=("parallel", "parallel")),
        cost_estimate=pl.CostEstimate(
            flops=flops,
            transcendentals=B * npix,
            bytes_accessed=bytes_accessed),
    )(x_flat, w_folded, bias)

    # Exact output shape -> no slice; just restore spatial dims (still NCHW, free).
    return out_flat.reshape(B, C_tr, H, W)


def _reference(x_nchw, gamma, beta, conv_w):
    # Pure-JAX reference (matches the PyTorch module).
    x = jnp.transpose(x_nchw, (0, 2, 3, 1)).astype(jnp.float32)  # NHWC
    mean = jnp.mean(x, axis=-1, keepdims=True)
    var = jnp.mean((x - mean) ** 2, axis=-1, keepdims=True)
    xn = (x - mean) / jnp.sqrt(var + EPS) * gamma.astype(jnp.float32) + beta.astype(jnp.float32)
    y = jnp.einsum("bhwc,oc->bhwo", xn, conv_w.astype(jnp.float32))
    return jnp.transpose(y, (0, 3, 1, 2)).astype(x_nchw.dtype)


if __name__ == "__main__":
    B, C_in, H, W = 2, 4, 16, 16
    C_tr = 32  # transformer_channels

    key = jax.random.PRNGKey(0)
    kx, kw, kg, kb = jax.random.split(key, 4)

    x = jax.random.normal(kx, (B, C_in, H, W), dtype=jnp.float32)

    # Parameters (shapes match the module; non-trivial gamma/beta to exercise folding):
    gamma = 1.0 + 0.1 * jax.random.normal(kg, (C_in,), dtype=jnp.float32)
    beta = 0.1 * jax.random.normal(kb, (C_in,), dtype=jnp.float32)
    conv_w = jax.random.normal(kw, (C_tr, C_in), dtype=jnp.float32) * (1.0 / jnp.sqrt(C_in))

    out = query_key_extractor(x, gamma, beta, conv_w)
    out = jax.block_until_ready(out)

    ref = _reference(x, gamma, beta, conv_w)
    assert out.shape == (B, C_tr, H, W), out.shape
    assert jnp.allclose(out, ref, atol=1e-4, rtol=1e-4), float(jnp.max(jnp.abs(out - ref)))

    print("KERNEL_OK")
</pallas_src>

<mosaic_0001>
module attributes {stable_mosaic.version = 11 : i64} {
  func.func @_qke_kernel(%arg0: i32, %arg1: i32, %arg2: memref<1x4x256xf32, #tpu.memory_space<vmem>>, %arg3: memref<32x4xf32, #tpu.memory_space<vmem>>, %arg4: memref<32x1xf32, #tpu.memory_space<vmem>>, %arg5: memref<1x32x256xf32, #tpu.memory_space<vmem>>) attributes {dimension_semantics = [#tpu.dimension_semantics<parallel>, #tpu.dimension_semantics<parallel>], iteration_bounds = array<i64: 2, 1>, scalar_prefetch = 0 : i64, scratch_operands = 0 : i64, tpu.core_type = #tpu.core_type<tc>, window_params = [{transform_indices = @transform_0, window_bounds = array<i64: 1, 4, 256>}, {pipeline_mode = #tpu.pipeline_mode<synchronous>, transform_indices = @transform_1, window_bounds = array<i64: 32, 4>}, {pipeline_mode = #tpu.pipeline_mode<synchronous>, transform_indices = @transform_2, window_bounds = array<i64: 32, 1>}, {transform_indices = @transform_3, window_bounds = array<i64: 1, 32, 256>}]} {
    %c0 = arith.constant 0 : index
    %c0_0 = arith.constant 0 : index
    %c0_1 = arith.constant 0 : index
    %0 = vector.load %arg2[%c0, %c0_0, %c0_1] : memref<1x4x256xf32, #tpu.memory_space<vmem>>, vector<1x4x256xf32>
    %1 = vector.shape_cast %0 : vector<1x4x256xf32> to vector<4x256xf32>
    %cst = arith.constant dense<0.000000e+00> : vector<256xf32>
    %2 = vector.multi_reduction <add>, %1, %cst [0] : vector<4x256xf32> to vector<256xf32>
    %3 = vector.shape_cast %2 : vector<256xf32> to vector<1x256xf32>
    %cst_2 = arith.constant 4.000000e+00 : f32
    %4 = vector.broadcast %cst_2 : f32 to vector<1x256xf32>
    %5 = arith.divf %3, %4 : vector<1x256xf32>
    %6 = vector.broadcast %5 : vector<1x256xf32> to vector<4x256xf32>
    %7 = arith.subf %1, %6 : vector<4x256xf32>
    %8 = arith.mulf %7, %7 : vector<4x256xf32>
    %cst_3 = arith.constant dense<0.000000e+00> : vector<256xf32>
    %9 = vector.multi_reduction <add>, %8, %cst_3 [0] : vector<4x256xf32> to vector<256xf32>
    %10 = vector.shape_cast %9 : vector<256xf32> to vector<1x256xf32>
    %cst_4 = arith.constant 4.000000e+00 : f32
    %11 = vector.broadcast %cst_4 : f32 to vector<1x256xf32>
    %12 = arith.divf %10, %11 : vector<1x256xf32>
    %cst_5 = arith.constant 9.99999974E-6 : f32
    %13 = vector.broadcast %cst_5 : f32 to vector<1x256xf32>
    %14 = arith.addf %12, %13 : vector<1x256xf32>
    %15 = math.rsqrt %14 : vector<1x256xf32>
    %16 = vector.broadcast %15 : vector<1x256xf32> to vector<4x256xf32>
    %17 = arith.mulf %7, %16 : vector<4x256xf32>
    %c0_6 = arith.constant 0 : index
    %c0_7 = arith.constant 0 : index
    %18 = vector.load %arg3[%c0_6, %c0_7] : memref<32x4xf32, #tpu.memory_space<vmem>>, vector<32x4xf32>
    %cst_8 = arith.constant dense<0.000000e+00> : vector<32x256xf32>
    %19 = tpu.matmul %18, %17, %cst_8 {dimension_numbers = #tpu.dot_dimension_numbers<[1], [0], [0], [1], [0, 0, 1, 1], [], []>} : vector<32x4xf32>, vector<4x256xf32>, vector<32x256xf32> -> vector<32x256xf32>
    %c0_9 = arith.constant 0 : index
    %c0_10 = arith.constant 0 : index
    %20 = vector.load %arg4[%c0_9, %c0_10] : memref<32x1xf32, #tpu.memory_space<vmem>>, vector<32x1xf32>
    %21 = vector.broadcast %20 : vector<32x1xf32> to vector<32x256xf32>
    %22 = arith.addf %19, %21 : vector<32x256xf32>
    %c0_11 = arith.constant 0 : index
    %c0_12 = arith.constant 0 : index
    %c0_13 = arith.constant 0 : index
    %23 = vector.load %arg5[%c0_11, %c0_12, %c0_13] : memref<1x32x256xf32, #tpu.memory_space<vmem>>, vector<1x32x256xf32>
    %24 = vector.shape_cast %23 : vector<1x32x256xf32> to vector<32x256xf32>
    %25 = vector.shape_cast %22 : vector<32x256xf32> to vector<1x32x256xf32>
    tpu.vector_store %arg5[%c0_11, %c0_12, %c0_13], %25 {strides = array<i32>} : memref<1x32x256xf32, #tpu.memory_space<vmem>>, vector<1x32x256xf32>,
    return
  }
  func.func @transform_0(%arg0: i32, %arg1: i32) -> (i32, i32, i32) {
    %c0_i32 = arith.constant 0 : i32
    %c0_i32_0 = arith.constant 0 : i32
    return %arg0, %c0_i32, %arg1 : i32, i32, i32
  }
  func.func @transform_1(%arg0: i32, %arg1: i32) -> (i32, i32) {
    %c0_i32 = arith.constant 0 : i32
    %c0_i32_0 = arith.constant 0 : i32
    %c0_i32_1 = arith.constant 0 : i32
    return %c0_i32, %c0_i32_0 : i32, i32
  }
  func.func @transform_2(%arg0: i32, %arg1: i32) -> (i32, i32) {
    %c0_i32 = arith.constant 0 : i32
    %c0_i32_0 = arith.constant 0 : i32
    %c0_i32_1 = arith.constant 0 : i32
    return %c0_i32, %c0_i32_0 : i32, i32
  }
  func.func @transform_3(%arg0: i32, %arg1: i32) -> (i32, i32, i32) {
    %c0_i32 = arith.constant 0 : i32
    %c0_i32_0 = arith.constant 0 : i32
    return %arg0, %c0_i32, %arg1 : i32, i32, i32
  }
}

</mosaic_0001>

<llo_original>
// kernel: tpu_custom_call.1
$region0: #{tpu_custom_call.1}
  #allocation0 [shape = 'u32[]', space=smem, size = 0x4, offset = 0x4, fixed_abs, tag = 'smem constant byte address 0x4 - core index']
  #allocation1 [shape = 'u32[144,128]{1,0:T(1,128)}', space=vmem, size = 0x12000, scoped, tag = 'internal scratch']
  %s0 = inlined_call_operand.vmem [shape: f32[2,4,256], index: 0, kind: input, shape index: {}]
  %s1 = inlined_call_operand.vmem [shape: f32[32,4], index: 1, kind: input, shape index: {}]
  %s2 = inlined_call_operand.vmem [shape: f32[32,1], index: 2, kind: input, shape index: {}]
  %s3 = inlined_call_operand.hbm [shape: f32[2,32,256], index: 3, kind: output, shape index: {}]
  %s4 = sld [smem:[#allocation0]]
  $region45: #{tpu_custom_call.1} parent=0
    _
  %s6 = ssub.s32 1, %s4
  %s7 = scalar_select 0, %s6, %s4
  $region1: #{tpu_custom_call.1} parent=0
    #allocation2 [shape = 'u8[65536]{0}', space=vmem, size = 0x10000, scoped, tag = 'output window, operand 0']
    #allocation3 [shape = 's32[2]{0}', space=sflag, size = 0x8, scoped, tag = 'scoped memory for tpu_custom_call.1']
    %8 = vsyncpa [#allocation3], 0
    %s9 = scalar_lea.sflag [#allocation3], 1
    %10 = vsyncpa %s9, 0
    loop: start=0, step=1, limit=4
    $region2: #{tpu_custom_call.1} parent=1 // loop_pre_header
      _
    $region3: #{tpu_custom_call.1} parent=1 // loop_header
      %s12 = sphi 0, %s16
      %p13 = scmp.ge.s32.totalorder %s12, 4
      %s19 = sphi 0, %s31
      %s20 = sphi 0, %s27
      %s21 = sphi 0, %s19
      %s22 = sphi 0, %s20
      %s23 = sphi 0, %s21
      %s24 = sphi 0, %s22
      %s36 = sphi 0, %s38
      %s39 = sphi 0, %s36
      %s40 = sphi 0, %s39
      %s56 = sphi 0, %s40
      %s60 = sphi 0, %s60
      %s62 = sphi 0, %s60
      %s63 = sphi 0, %s62
      %s77 = sphi 0, %s63
      %s81 = sphi 0, %s81
      %s83 = sphi 0, %s81
      %s84 = sphi 0, %s83
      %s98 = sphi 0, %s84
      %s106 = sphi 0, %s108
      %s109 = sphi 0, %s106
      %s110 = sphi 0, %s109
      %s126 = sphi 0, %s110
    $region4: #{tpu_custom_call.1} parent=1 // loop_header_branch
      %15 = sbr.rel (%p13) target = $region8
    $region5: #{tpu_custom_call.1} parent=1 // loop_body
      %s17 = ssub.s32 %s12, 1
      %s18 = ssub.s32 %s12, 2
      %s25 = sadd.s32 1, %s20
      %p26 = scmp.ge.s32.totalorder %s25, 1
      %s27 = scalar_select %p26, 0, %s25
      %s28 = sadd.s32 1, %s19
      %s29 = scalar_select %p26, %s28, %s19
      %p30 = scmp.ge.s32.totalorder %s29, 2
      %s31 = scalar_select %p30, 0, %s29
      %s32 = ssub.s32 %s19, %s31
      %s33 = ssub.s32 %s20, %s27
      %s34 = sor.u32 %s32, %s33
      %p35 = scmp.eq.s32.totalorder %s34, 0
      %s37 = sadd.s32 %s36, 1
      %s38 = scalar_select %p35, %s36, %s37
      %p41 = pneg %p35
      %p42 = scmp.eq.s32.totalorder %s12, 1
      %p43 = por %p41, %p42
      %p44 = scmp.ne.s32.totalorder %s36, %s39
      %p45 = scmp.eq.s32.totalorder %s12, 0
      %p46 = por %p44, %p45
      %p47 = scmp.ne.s32.totalorder %s36, %s39
      %p48 = scmp.eq.s32.totalorder %s17, 1
      %p49 = por %p47, %p48
      %p50 = scmp.ne.s32.totalorder %s39, %s40
      %p51 = scmp.eq.s32.totalorder %s17, 0
      %p52 = por %p50, %p51
      %p53 = scmp.ne.s32.totalorder %s39, %s40
      %p54 = scmp.eq.s32.totalorder %s18, 1
      %p55 = por %p53, %p54
      %p57 = scmp.ne.s32.totalorder %s40, %s56
      %p58 = scmp.eq.s32.totalorder %s18, 0
      %p59 = por %p57, %p58
      %s61 = sadd.s32 %s60, 1
      %p64 = scmp.eq.s32.totalorder %s12, 1
      %p65 = scmp.ne.s32.totalorder %s60, %s62
      %p66 = scmp.eq.s32.totalorder %s12, 0
      %p67 = por %p65, %p66
      %p68 = scmp.ne.s32.totalorder %s60, %s62
      %p69 = scmp.eq.s32.totalorder %s17, 1
      %p70 = por %p68, %p69
      %p71 = scmp.ne.s32.totalorder %s62, %s63
      %p72 = scmp.eq.s32.totalorder %s17, 0
      %p73 = por %p71, %p72
      %p74 = scmp.ne.s32.totalorder %s62, %s63
      %p75 = scmp.eq.s32.totalorder %s18, 1
      %p76 = por %p74, %p75
      %p78 = scmp.ne.s32.totalorder %s63, %s77
      %p79 = scmp.eq.s32.totalorder %s18, 0
      %p80 = por %p78, %p79
      %s82 = sadd.s32 %s81, 1
      %p85 = scmp.eq.s32.totalorder %s12, 1
      %p86 = scmp.ne.s32.totalorder %s81, %s83
      %p87 = scmp.eq.s32.totalorder %s12, 0
      %p88 = por %p86, %p87
      %p89 = scmp.ne.s32.totalorder %s81, %s83
      %p90 = scmp.eq.s32.totalorder %s17, 1
      %p91 = por %p89, %p90
      %p92 = scmp.ne.s32.totalorder %s83, %s84
      %p93 = scmp.eq.s32.totalorder %s17, 0
      %p94 = por %p92, %p93
      %p95 = scmp.ne.s32.totalorder %s83, %s84
      %p96 = scmp.eq.s32.totalorder %s18, 1
      %p97 = por %p95, %p96
      %p99 = scmp.ne.s32.totalorder %s84, %s98
      %p100 = scmp.eq.s32.totalorder %s18, 0
      %p101 = por %p99, %p100
      %s102 = ssub.s32 %s19, %s31
      %s103 = ssub.s32 %s20, %s27
      %s104 = sor.u32 %s102, %s103
      %p105 = scmp.eq.s32.totalorder %s104, 0
      %s107 = sadd.s32 %s106, 1
      %s108 = scalar_select %p105, %s106, %s107
      %p111 = pneg %p105
      %p112 = scmp.eq.s32.totalorder %s12, 1
      %p113 = por %p111, %p112
      %p114 = scmp.ne.s32.totalorder %s106, %s109
      %p115 = scmp.eq.s32.totalorder %s12, 0
      %p116 = por %p114, %p115
      %p117 = scmp.ne.s32.totalorder %s106, %s109
      %p118 = scmp.eq.s32.totalorder %s17, 1
      %p119 = por %p117, %p118
      %p120 = scmp.ne.s32.totalorder %s109, %s110
      %p121 = scmp.eq.s32.totalorder %s17, 0
      %p122 = por %p120, %p121
      %p123 = scmp.ne.s32.totalorder %s109, %s110
      %p124 = scmp.eq.s32.totalorder %s18, 1
      %p125 = por %p123, %p124
      %p127 = scmp.ne.s32.totalorder %s110, %s126
      %p128 = scmp.eq.s32.totalorder %s18, 0
      %p129 = por %p127, %p128
      %p130 = scmp.le.s32.totalorder 1, %s12
      %p131 = scmp.lt.s32.totalorder %s12, 3
      %p132 = pnand %p130, %p131
      %p133 = pneg %p132
      // Predicated region
      $region9: #{tpu_custom_call.1} parent=5 // pred_check
        _
      $region10: #{tpu_custom_call.1} parent=5 // pred_check_branch
        %135 = sbr.rel (%p132) target = $region12
      $region11: #{tpu_custom_call.1} parent=5 // pred_region
        %s136 = ssub.s32 %s12, 1
        // Predicated region
        $region13: #{tpu_custom_call.1} parent=11 // pred_check
          %p137 = pneg %p73
        $region14: #{tpu_custom_call.1} parent=11 // pred_check_branch
          %139 = sbr.rel (%p137) target = $region16
        $region15: #{tpu_custom_call.1} parent=11 // pred_region
          _
        $region16: #{tpu_custom_call.1} parent=11 // pred_fallthru
          _
        // Predicated region
        $region17: #{tpu_custom_call.1} parent=11 // pred_check
          %p140 = pneg %p94
        $region18: #{tpu_custom_call.1} parent=11 // pred_check_branch
          %142 = sbr.rel (%p140) target = $region20
        $region19: #{tpu_custom_call.1} parent=11 // pred_region
          _
        $region20: #{tpu_custom_call.1} parent=11 // pred_fallthru
          _
      $region12: #{tpu_custom_call.1} parent=5 // pred_fallthru
        _
      %p143 = scmp.lt.s32.totalorder %s12, 2
      // Predicated region
      $region21: #{tpu_custom_call.1} parent=5 // pred_check
        %p144 = pneg %p143
      $region22: #{tpu_custom_call.1} parent=5 // pred_check_branch
        %146 = sbr.rel (%p144) target = $region24
      $region23: #{tpu_custom_call.1} parent=5 // pred_region
        // Predicated region
        $region25: #{tpu_custom_call.1} parent=23 // pred_check
          %p147 = pneg %p46
        $region26: #{tpu_custom_call.1} parent=23 // pred_check_branch
          %149 = sbr.rel (%p147) target = $region28
        $region27: #{tpu_custom_call.1} parent=23 // pred_region
          %s150 = smul.u32 2, %s20
          %p151 = scmp.lt.s32.totalorder %s19, 1
          %s152 = scalar_select %p151, %s19, 1
          %p153 = scmp.lt.s32.totalorder %s150, 1
          %s154 = scalar_select %p153, %s150, 1
          %s155 = smul.addr %s152, 2
          %s156 = sadd.s32 %s154, %s155
          %s157 = smul.addr %s156, 4
          %s158 = scalar_lea.vmem %s0, %s157
          %s159 = smul.u32 2, %s20
        $region28: #{tpu_custom_call.1} parent=23 // pred_fallthru
          _
      $region24: #{tpu_custom_call.1} parent=5 // pred_fallthru
        _
      %p160 = scmp.le.s32.totalorder 1, %s12
      %p161 = scmp.lt.s32.totalorder %s12, 3
      %p162 = pnand %p160, %p161
      %p163 = pneg %p162
      // Predicated region
      $region29: #{tpu_custom_call.1} parent=5 // pred_check
        _
      $region30: #{tpu_custom_call.1} parent=5 // pred_check_branch
        %165 = sbr.rel (%p162) target = $region32
      $region31: #{tpu_custom_call.1} parent=5 // pred_region
        %s166 = ssub.s32 %s12, 1
        %s167 = smul.u32 2, %s22
        %p168 = scmp.lt.s32.totalorder %s21, 1
        %s169 = scalar_select %p168, %s21, 1
        %p170 = scmp.lt.s32.totalorder %s167, 1
        %s171 = scalar_select %p170, %s167, 1
        %s172 = smul.addr %s169, 2
        %s173 = sadd.s32 %s171, %s172
        %s174 = smul.addr %s173, 4
        %s175 = scalar_lea.vmem %s0, %s174
        %p176 = pneg %p52
        %p177 = pneg %p49
        %p178 = pneg %p73
        %p179 = pneg %p70
        %p180 = pneg %p94
        %p181 = pneg %p91
        %p182 = pneg %p122
        %p183 = pneg %p119
        %s184 = sand.u32 %s109, 1
        %s185 = scalar_lea.sflag [#allocation3], %s184
        %s186 = sand.u32 %s109, 1
        %s187 = smul.addr %s186, 64
        %s188 = scalar_lea.vmem [#allocation2], %s187
        %s189 = smul.u32 2, %s22
        %p190 = scmp.lt.s32.totalorder %s21, 1
        %s191 = scalar_select %p190, %s21, 1
        %p192 = scmp.lt.s32.totalorder %s189, 1
        %s193 = scalar_select %p192, %s189, 1
        %s194 = smul.addr %s191, 2
        %s195 = sadd.s32 %s193, %s194
        %s196 = smul.addr %s195, 4
        %s197 = scalar_lea.vmem %s0, %s196
        %s198 = smul.u32 2, %s22
        %s199 = smul.u32 2, %s22
        %v200 = vld [vmem:[%s197] sm:$0xff]
        %v202 = vcombine.high %v200, %v200
        %vm204 = vcmask 1043456
        %v205 = vsel %vm204, %v200, 0.0
        %v206 = vrot.slane %v205, 4
        %v207 = vadd.f32 %v205, %v206
        %v208 = vrot.slane %v207, 2
        %v209 = vadd.f32 %v207, %v208
        %v210 = vrot.slane %v209, 1
        %v211 = vadd.f32 %v209, %v210
        %v212 = vsel %vm204, %v202, 0.0
        %v213 = vrot.slane %v212, 4
        %v214 = vadd.f32 %v212, %v213
        %v215 = vrot.slane %v214, 2
        %v216 = vadd.f32 %v214, %v215
        %v217 = vrot.slane %v216, 1
        %v218 = vadd.f32 %v216, %v217
        %v219 = vrcp.pop 4.0
        %v220 = vmul.f32 %v211, %v219
        %v221 = vmul.f32 %v218, %v219
        %v224 = vcombine.low %v220, %v221
        %v226 = vsub.f32 %v200, %v224
        %v227 = vmul.f32 %v226, %v226
        %v229 = vcombine.high %v227, %v227
        %v231 = vsel %vm204, %v227, 0.0
        %v232 = vrot.slane %v231, 4
        %v233 = vadd.f32 %v231, %v232
        %v234 = vrot.slane %v233, 2
        %v235 = vadd.f32 %v233, %v234
        %v236 = vrot.slane %v235, 1
        %v237 = vadd.f32 %v235, %v236
        %v238 = vsel %vm204, %v229, 0.0
        %v239 = vrot.slane %v238, 4
        %v240 = vadd.f32 %v238, %v239
        %v241 = vrot.slane %v240, 2
        %v242 = vadd.f32 %v240, %v241
        %v243 = vrot.slane %v242, 1
        %v244 = vadd.f32 %v242, %v243
        %v245 = vmul.f32 %v237, %v219
        %v246 = vmul.f32 %v244, %v219
        %v247 = vadd.f32 %v245, 1e-05
        %v248 = vadd.f32 %v246, 1e-05
        %v249 = vrsqrt.pop %v247
        %v250 = vrsqrt.pop %v248
        %v253 = vcombine.low %v249, %v250
        %v255 = vmul.f32 %v226, %v253
        %v256 = vld [vmem:[%s1] sm:$0xff]
        %v257 = vld [vmem:[%s1 + $0x8] sm:$0xff]
        %v258 = vld [vmem:[%s1 + $0x10] sm:$0xff]
        %v259 = vld [vmem:[%s1 + $0x18] sm:$0xff]
        %v260 = vld [vmem:[%s2] sm:$0xff]
        %v261 = vld [vmem:[%s2 + $0x8] sm:$0xff]
        %v262 = vld [vmem:[%s2 + $0x10] sm:$0xff]
        %v263 = vld [vmem:[%s2 + $0x18] sm:$0xff]
        %265 = vset.pattern.permute.xlu0 0
        %266 = vperm.xlu0 %265, %v260
        %v267 = vpop.permute.xlu0 %266
        %270 = vset.pattern.permute.xlu0 0
        %271 = vperm.xlu0 %270, %v261
        %v272 = vpop.permute.xlu0 %271
        %275 = vset.pattern.permute.xlu0 0
        %276 = vperm.xlu0 %275, %v262
        %v277 = vpop.permute.xlu0 %276
        %280 = vset.pattern.permute.xlu0 0
        %281 = vperm.xlu0 %280, %v263
        %v282 = vpop.permute.xlu0 %281
        %v285 = vcombine.high %v255, %v255
        %vm286 = vcmask 31744
        %v288 = vsel %vm286, %v256, 0
        %v291 = vsel %vm286, %v257, 0
        %v294 = vsel %vm286, %v258, 0
        %v297 = vsel %vm286, %v259, 0
        %v299 = vsel %vm204, %v255, 0
        %v301 = vsel %vm204, %v285, 0
        %303 = vmatprep.subr.mxu0 0.0
        %304 = vmatpush1.msra.mxu0 0.0
        %305 = vmatprep.subr.mxu0 0.0
        %306 = vmatpush1.msra.mxu0 0.0
        %307 = vmatprep.subr.mxu0 0.0
        %308 = vmatpush1.msra.mxu0 0.0
        %309 = vmatprep.subr.mxu0 0.0
        %310 = vmatpush1.msra.mxu0 0.0
        %311 = vmatprep.subr.mxu0 0.0
        %312 = vmatpush1.msra.mxu0 0.0
        %313 = vmatprep.subr.mxu0 0.0
        %314 = vmatpush1.msra.mxu0 0.0
        %315 = vmatprep.subr.mxu0 0.0
        %316 = vmatpush1.msra.mxu0 0.0
        %317 = vmatprep.subr.mxu0 0.0
        %318 = vmatpush1.msra.mxu0 0.0
        %319 = vmatprep.subr.mxu0 0.0
        %320 = vmatpush1.msra.mxu0 0.0
        %321 = vmatprep.subr.mxu0 0.0
        %322 = vmatpush1.msra.mxu0 0.0
        %323 = vmatprep.subr.mxu0 0.0
        %324 = vmatpush1.msra.mxu0 0.0
        %325 = vmatprep.subr.mxu0 0.0
        %326 = vmatpush1.msra.mxu0 0.0
        %327 = vmatprep.subr.mxu0 0.0
        %328 = vmatpush1.msra.mxu0 0.0
        %329 = vmatprep.subr.mxu0 0.0
        %330 = vmatpush1.msra.mxu0 0.0
        %331 = vmatprep.subr.mxu0 0.0
        %332 = vmatpush1.msra.mxu0 0.0
        %333 = vmatprep.subr.mxu0 %v301
        %334 = vmatpush1.msra.mxu0 %v299
        %335 = vmatprep.subr.mxu0 0.0
        %336 = vmatpush2.msra.mxu0 0.0
        %337 = vmatprep.subr.mxu0 0.0
        %338 = vmatpush2.msra.mxu0 0.0
        %339 = vmatprep.subr.mxu0 0.0
        %340 = vmatpush2.msra.mxu0 0.0
        %341 = vmatprep.subr.mxu0 0.0
        %342 = vmatpush2.msra.mxu0 0.0
        %343 = vmatprep.subr.mxu0 0.0
        %344 = vmatpush2.msra.mxu0 0.0
        %345 = vmatprep.subr.mxu0 0.0
        %346 = vmatpush2.msra.mxu0 0.0
        %347 = vmatprep.subr.mxu0 0.0
        %348 = vmatpush2.msra.mxu0 0.0
        %349 = vmatprep.subr.mxu0 0.0
        %350 = vmatpush2.msra.mxu0 0.0
        %351 = vmatprep.subr.mxu0 0.0
        %352 = vmatpush2.msra.mxu0 0.0
        %353 = vmatprep.subr.mxu0 0.0
        %354 = vmatpush2.msra.mxu0 0.0
        %355 = vmatprep.subr.mxu0 0.0
        %356 = vmatpush2.msra.mxu0 0.0
        %357 = vmatprep.subr.mxu0 0.0
        %358 = vmatpush2.msra.mxu0 0.0
        %359 = vmatprep.subr.mxu0 0.0
        %360 = vmatpush2.msra.mxu0 0.0
        %361 = vmatprep.subr.mxu0 0.0
        %362 = vmatpush2.msra.mxu0 0.0
        %363 = vmatprep.subr.mxu0 0.0
        %364 = vmatpush2.msra.mxu0 0.0
        %365 = vmatprep.subr.mxu0 0.0
        %366 = vmatpush2.msra.mxu0 0.0
        %367 = vmatprep.mubr.f32.mxu0 0.0
        %368 = vmatmul.mubr.f32.gmra.mxu0 %v288
        %v369 = vpop.f32.mrf.mxu0
        %v370 = vadd.f32 %v267, %v369
        %v371 = vpop.f32.mrf.mxu0
        %v372 = vadd.f32 %v267, %v371
        %373 = vmatprep.mubr.f32.mxu0 0.0
        %374 = vmatmul.mubr.f32.gmra.mxu0 %v291
        %v375 = vpop.f32.mrf.mxu0
        %v376 = vadd.f32 %v272, %v375
        %v377 = vpop.f32.mrf.mxu0
        %v378 = vadd.f32 %v272, %v377
        %379 = vmatprep.mubr.f32.mxu0 0.0
        %380 = vmatmul.mubr.f32.gmra.mxu0 %v294
        %v381 = vpop.f32.mrf.mxu0
        %v382 = vadd.f32 %v277, %v381
        %v383 = vpop.f32.mrf.mxu0
        %v384 = vadd.f32 %v277, %v383
        %385 = vmatprep.mubr.f32.mxu0 0.0
        %386 = vmatmul.mubr.f32.gmra.mxu0 %v297
        %v387 = vpop.f32.mrf.mxu0
        %v388 = vadd.f32 %v282, %v387
        %v389 = vpop.f32.mrf.mxu0
        %v390 = vadd.f32 %v282, %v389
        %391 = vdwg.mxu0
        %392 = vst [vmem:[%s188] sm:$0xff] %v370
        %393 = vst [vmem:[%s188 + $0x8] sm:$0xff] %v372
        %394 = vst [vmem:[%s188 + $0x10] sm:$0xff] %v376
        %395 = vst [vmem:[%s188 + $0x18] sm:$0xff] %v378
        %396 = vst [vmem:[%s188 + $0x20] sm:$0xff] %v382
        %397 = vst [vmem:[%s188 + $0x28] sm:$0xff] %v384
        %398 = vst [vmem:[%s188 + $0x30] sm:$0xff] %v388
        %399 = vst [vmem:[%s188 + $0x38] sm:$0xff] %v390
        %s400 = sand.u32 %s109, 1
        %s401 = scalar_lea.sflag [#allocation3], %s400
        %s402 = sand.u32 %s109, 1
        %s403 = smul.addr %s402, 64
        %s404 = scalar_lea.vmem [#allocation2], %s403
        // Predicated region
        $region33: #{tpu_custom_call.1} parent=31 // pred_check
          %p405 = pneg %p119
        $region34: #{tpu_custom_call.1} parent=31 // pred_check_branch
          %407 = sbr.rel (%p405) target = $region36
        $region35: #{tpu_custom_call.1} parent=31 // pred_region
          %s408 = smul.u32 2, %s22
          %s410 = ssub.s32 1024, 1024
          %411 = vsyncadd %s401, %s410
          %s412 = smul.addr %s21, 8
          %s413 = sadd.s32 %s408, %s412
          %s414 = smul.addr %s413, 128
          %s415 = scalar_lea.hbm %s3, %s414
          %s416 = sshll.u32 %s404, 4
          %s417 = int_to_ptr.vmem [resolvable:$true] %s416
          %422 = dma.vmem_to_hbm [thread:$0]  %s417, 1024, %s415, %s401, 256, 256, 16
        $region36: #{tpu_custom_call.1} parent=31 // pred_fallthru
          _
      $region32: #{tpu_custom_call.1} parent=5 // pred_fallthru
        _
      %p423 = scmp.le.s32.totalorder 2, %s12
      // Predicated region
      $region37: #{tpu_custom_call.1} parent=5 // pred_check
        %p424 = pneg %p423
      $region38: #{tpu_custom_call.1} parent=5 // pred_check_branch
        %426 = sbr.rel (%p424) target = $region40
      $region39: #{tpu_custom_call.1} parent=5 // pred_region
        %s427 = ssub.s32 %s12, 2
        // Predicated region
        $region41: #{tpu_custom_call.1} parent=39 // pred_check
          %p428 = pneg %p125
        $region42: #{tpu_custom_call.1} parent=39 // pred_check_branch
          %430 = sbr.rel (%p428) target = $region44
        $region43: #{tpu_custom_call.1} parent=39 // pred_region
          %s431 = sand.u32 %s110, 1
          %s432 = scalar_lea.sflag [#allocation3], %s431
          %s433 = sand.u32 %s110, 1
          %s434 = smul.addr %s433, 64
          %s435 = scalar_lea.vmem [#allocation2], %s434
          %436 = dma.done %s432, 1024
        $region44: #{tpu_custom_call.1} parent=39 // pred_fallthru
          _
      $region40: #{tpu_custom_call.1} parent=5 // pred_fallthru
        _
    $region6: #{tpu_custom_call.1} parent=1 // loop_footer
      %s16 = sadd.s32 1, %s12
    $region7: #{tpu_custom_call.1} parent=1 // loop_footer_branch
      %11 = sbr.rel target = $region3
    $region8: #{tpu_custom_call.1} parent=1 // loop_exit
      _
    %437 = vsyncpa [#allocation3], 1
    %s438 = scalar_lea.sflag [#allocation3], 1
    %439 = vsyncpa %s438, 1

</llo_original>
